<compile_context>
chip_gen: v7x
topology: tpu7x:2x2x1
jax: 0.10.0
libtpu: 0.0.40
codegen_flags: <defaults>
</compile_context>

<pallas_src>
import functools

import jax
import jax.numpy as jnp
from jax import lax
from jax.experimental import pallas as pl
from jax.experimental.pallas import tpu as pltpu


KERNEL_T = 9                       # temporal kernel size (from the module)
PAD_T = (KERNEL_T - 1) // 2        # "same" temporal padding for stride 1


def _tcn_kernel(x_ref, w_ref, shift_ref, o_ref, *, n_taps, v, m):
    """Fused temporal conv + folded-BN + ReLU for one fused batch block.

    x_ref:     (R, (T+2*PAD)*V) bf16  padded activations, R = Bn*C fused rows
    w_ref:     (K, R, R)        bf16  per-tap weights, block-diagonal over the
                                      fused batch elements, BN scale folded in
    shift_ref: (R, 1)           f32   beta + (conv_bias - mean) * scale
    o_ref:     (R, M)           f32   output, M = T_out*V lane-dense (mult of 128)
    """
    x = x_ref[...]                                    # single VMEM -> vreg load
    acc = jnp.zeros(o_ref.shape, jnp.float32)
    # In-kernel "im2col": 9 statically-unrolled shifted-window dots, f32 accum.
    for k in range(n_taps):
        xk = x[:, k * v:k * v + m]                    # temporal tap-k window
        acc = acc + jnp.dot(w_ref[k], xk, preferred_element_type=jnp.float32)
    # f32 epilogue: folded conv-bias/BN shift, then ReLU.  Dense (8, 256) store.
    o_ref[...] = jnp.maximum(acc + shift_ref[...], 0.0).astype(o_ref.dtype)


def _pick_batch_block(n, c):
    """Batch elements fused per grid step.

    Smallest Bn dividing N whose fused row count Bn*C is a multiple of 8
    sublanes (unmasked f32 stores); otherwise fall back to Bn = N (full-extent
    rows are always layout-legal).  At (N=2, C=4) this returns 2: one step.
    """
    for bn in range(1, n + 1):
        if n % bn == 0 and (bn * c) % 8 == 0:
            return bn
    return n


def tcn_forward(x_nchw, conv_w, conv_b, bn_gamma, bn_beta, bn_mean, bn_var,
                eps=1e-5, stride=1):
    """x_nchw: (N, C, T, V) float32 — same axis convention as the PyTorch module."""
    assert stride == 1, "temporal stride > 1 not supported by this kernel"
    # TODO(synk): temporal stride > 1 (changes T_out and the window offsets).
    N, C, T, V = x_nchw.shape
    T_out = T                          # stride 1 + symmetric temporal padding
    M = T_out * V                      # output lane dim (256 here, 128-multiple)
    Tp = T + 2 * PAD_T
    L = Tp * V                         # padded input lane dim (384 here)

    Bn = _pick_batch_block(N, C)       # 2 at the toy config -> single grid step
    R = Bn * C                         # fused sublane rows per step (8 here)
    grid = (N // Bn,)

    # ---- wrapper glue (tiny; no im2col, no transpose anywhere) --------------
    # Temporal zero-pad + bf16 cast (one fused XLA op), flattened to
    # (N*C, Tp*V) via a contiguous reshape.
    x_pad = jnp.pad(x_nchw, ((0, 0), (0, 0), (PAD_T, PAD_T), (0, 0)))
    x_rows = x_pad.astype(jnp.bfloat16).reshape(N * C, L)

    # Fold conv bias + BatchNorm (eval) into per-channel scale/shift; fold the
    # scale into the weight rows before the bf16 cast so the kernel epilogue is
    # only `+ shift` and ReLU.
    scale = bn_gamma / jnp.sqrt(bn_var + eps)                      # (C,)
    shift = bn_beta + (conv_b - bn_mean) * scale                   # (C,)
    w_fold = conv_w[:, :, :, 0] * scale[:, None, None]             # (Co, Ci, K) f32
    w_k = jnp.transpose(w_fold, (2, 0, 1))                         # (K, Co, Ci)
    # Block-diagonal over the Bn fused batch elements: output row b*C + o only
    # mixes input rows b*C + c of the sublane-stacked activations.
    eye = jnp.eye(Bn, dtype=w_k.dtype)
    w_bd = jnp.einsum('bd,koc->kbodc', eye, w_k).reshape(KERNEL_T, R, R)
    w_bd = w_bd.astype(jnp.bfloat16)
    shift_rows = jnp.tile(shift, Bn).reshape(R, 1).astype(jnp.float32)

    out = pl.pallas_call(
        functools.partial(_tcn_kernel, n_taps=KERNEL_T, v=V, m=M),
        out_shape=jax.ShapeDtypeStruct((N * C, M), jnp.float32),
        grid_spec=pltpu.PrefetchScalarGridSpec(
            num_scalar_prefetch=0,
            grid=grid,                                     # (1,) at toy shapes
            in_specs=[
                pl.BlockSpec((R, L), lambda b: (b, 0)),
                pl.BlockSpec((KERNEL_T, R, R), lambda b: (0, 0, 0)),
                pl.BlockSpec((R, 1), lambda b: (0, 0)),
            ],
            out_specs=pl.BlockSpec((R, M), lambda b: (b, 0)),
        ),
        compiler_params=pltpu.CompilerParams(
            dimension_semantics=("parallel",)),
    )(x_rows, w_bd, shift_rows)

    # TODO(synk): for production ST-GCN shapes (C>=64, T~300, V=25) tile the M
    # lane dim (512-lane multiples, double-buffered) and set vmem_limit_bytes.
    # TODO(synk): emit bf16 output if the downstream layer consumes bf16.
    # (N*C, M) -> (N, C, T_out, V): contiguous reshape only, no transpose.
    return out.reshape(N, C, T_out, V)


def _reference(x_nchw, conv_w, conv_b, bn_gamma, bn_beta, bn_mean, bn_var, eps=1e-5):
    """Pure-JAX reference of the PyTorch forward (eval mode), f32 throughout."""
    y = lax.conv_general_dilated(
        x_nchw, conv_w, window_strides=(1, 1),
        padding=((PAD_T, PAD_T), (0, 0)),
        dimension_numbers=("NCHW", "OIHW", "NCHW"),
        precision=lax.Precision.HIGHEST)
    y = y + conv_b.reshape(1, -1, 1, 1)
    y = (y - bn_mean.reshape(1, -1, 1, 1)) / jnp.sqrt(bn_var.reshape(1, -1, 1, 1) + eps)
    y = y * bn_gamma.reshape(1, -1, 1, 1) + bn_beta.reshape(1, -1, 1, 1)
    return jnp.maximum(y, 0.0)


def _reference_bf16(x_nchw, conv_w, conv_b, bn_gamma, bn_beta, bn_mean, bn_var, eps=1e-5):
    """Mirrors the kernel math exactly: BN scale folded into the weight before
    the bf16 cast, bf16 activations, f32 accumulation and epilogue."""
    N, C, T, V = x_nchw.shape
    scale = bn_gamma / jnp.sqrt(bn_var + eps)
    shift = bn_beta + (conv_b - bn_mean) * scale
    w_fold = conv_w[:, :, :, 0] * scale[:, None, None]             # (Co, Ci, K)
    w_q = w_fold.astype(jnp.bfloat16).astype(jnp.float32)
    x_q = jnp.pad(x_nchw, ((0, 0), (0, 0), (PAD_T, PAD_T), (0, 0)))
    x_q = x_q.astype(jnp.bfloat16).astype(jnp.float32)
    y = jnp.zeros((N, C, T, V), jnp.float32)
    for k in range(KERNEL_T):
        y = y + jnp.einsum('oc,nctv->notv', w_q[:, :, k], x_q[:, :, k:k + T, :],
                           precision=lax.Precision.HIGHEST)
    y = y + shift.reshape(1, -1, 1, 1)
    return jnp.maximum(y, 0.0)


if __name__ == "__main__":
    # Small, deterministic config consistent with the module:
    # feature_dim_size (C) = 4, input_frames (T) = 16, joints (V) = 16, batch = 2.
    N, C, T, V = 2, 4, 16, 16

    key = jax.random.PRNGKey(0)
    k_x, k_w, k_b, k_g, k_be, k_m, k_v = jax.random.split(key, 7)

    x = jax.random.normal(k_x, (N, C, T, V), dtype=jnp.float32)

    # Deterministic params (shapes from nn.Conv2d(C, C, (9,1)) + BatchNorm2d(C)).
    conv_w = 0.1 * jax.random.normal(k_w, (C, C, KERNEL_T, 1), dtype=jnp.float32)
    conv_b = 0.1 * jax.random.normal(k_b, (C,), dtype=jnp.float32)
    bn_gamma = 1.0 + 0.1 * jax.random.normal(k_g, (C,), dtype=jnp.float32)
    bn_beta = 0.1 * jax.random.normal(k_be, (C,), dtype=jnp.float32)
    bn_mean = 0.1 * jax.random.normal(k_m, (C,), dtype=jnp.float32)
    bn_var = jnp.abs(1.0 + 0.1 * jax.random.normal(k_v, (C,), dtype=jnp.float32))

    fwd = jax.jit(functools.partial(tcn_forward, eps=1e-5, stride=1))
    out = fwd(x, conv_w, conv_b, bn_gamma, bn_beta, bn_mean, bn_var)
    out = jax.block_until_ready(out)
    assert out.shape == (N, C, T, V), out.shape

    # Primary check: reference whose operands are rounded exactly like the
    # kernel's MXU operands (isolates the intentional bf16 quantization).
    ref_q = _reference_bf16(x, conv_w, conv_b, bn_gamma, bn_beta, bn_mean, bn_var)
    err_q = float(jnp.max(jnp.abs(out - ref_q)))
    assert err_q < 2e-3, err_q

    # Secondary check: full-f32 reference (tolerance covers bf16 operand rounding).
    ref_f32 = _reference(x, conv_w, conv_b, bn_gamma, bn_beta, bn_mean, bn_var)
    err_f32 = float(jnp.max(jnp.abs(out - ref_f32)))
    assert err_f32 < 5e-2, err_f32

    print("KERNEL_OK")
</pallas_src>

<mosaic_0001>
module attributes {stable_mosaic.version = 11 : i64} {
  func.func @_tcn_kernel(%arg0: i32, %arg1: memref<8x384xbf16, #tpu.memory_space<vmem>>, %arg2: memref<9x8x8xbf16, #tpu.memory_space<vmem>>, %arg3: memref<8x1xf32, #tpu.memory_space<vmem>>, %arg4: memref<8x256xf32, #tpu.memory_space<vmem>>) attributes {dimension_semantics = [#tpu.dimension_semantics<parallel>], iteration_bounds = array<i64: 1>, scalar_prefetch = 0 : i64, scratch_operands = 0 : i64, tpu.core_type = #tpu.core_type<tc>, window_params = [{transform_indices = @transform_0, window_bounds = array<i64: 8, 384>}, {pipeline_mode = #tpu.pipeline_mode<synchronous>, transform_indices = @transform_1, window_bounds = array<i64: 9, 8, 8>}, {pipeline_mode = #tpu.pipeline_mode<synchronous>, transform_indices = @transform_2, window_bounds = array<i64: 8, 1>}, {transform_indices = @transform_3, window_bounds = array<i64: 8, 256>}]} {
    %c0 = arith.constant 0 : index
    %c0_0 = arith.constant 0 : index
    %0 = vector.load %arg1[%c0, %c0_0] : memref<8x384xbf16, #tpu.memory_space<vmem>>, vector<8x384xbf16>
    %cst = arith.constant 0.000000e+00 : f32
    %1 = vector.broadcast %cst : f32 to vector<8x256xf32>
    %2 = vector.extract_strided_slice %0 {offsets = [0, 0], sizes = [8, 256], strides = [1, 1]} : vector<8x384xbf16> to vector<8x256xbf16>
    %c0_1 = arith.constant 0 : index
    %c0_2 = arith.constant 0 : index
    %c0_3 = arith.constant 0 : index
    %3 = vector.load %arg2[%c0_1, %c0_2, %c0_3] : memref<9x8x8xbf16, #tpu.memory_space<vmem>>, vector<1x8x8xbf16>
    %4 = vector.shape_cast %3 : vector<1x8x8xbf16> to vector<8x8xbf16>
    %cst_4 = arith.constant dense<0.000000e+00> : vector<8x256xf32>
    %5 = tpu.matmul %4, %2, %cst_4 {dimension_numbers = #tpu.dot_dimension_numbers<[1], [0], [0], [1], [0, 0, 1, 1], [], []>} : vector<8x8xbf16>, vector<8x256xbf16>, vector<8x256xf32> -> vector<8x256xf32>
    %6 = arith.addf %1, %5 : vector<8x256xf32>
    %7 = vector.extract_strided_slice %0 {offsets = [0, 16], sizes = [8, 256], strides = [1, 1]} : vector<8x384xbf16> to vector<8x256xbf16>
    %c1 = arith.constant 1 : index
    %c0_5 = arith.constant 0 : index
    %c0_6 = arith.constant 0 : index
    %8 = vector.load %arg2[%c1, %c0_5, %c0_6] : memref<9x8x8xbf16, #tpu.memory_space<vmem>>, vector<1x8x8xbf16>
    %9 = vector.shape_cast %8 : vector<1x8x8xbf16> to vector<8x8xbf16>
    %cst_7 = arith.constant dense<0.000000e+00> : vector<8x256xf32>
    %10 = tpu.matmul %9, %7, %cst_7 {dimension_numbers = #tpu.dot_dimension_numbers<[1], [0], [0], [1], [0, 0, 1, 1], [], []>} : vector<8x8xbf16>, vector<8x256xbf16>, vector<8x256xf32> -> vector<8x256xf32>
    %11 = arith.addf %6, %10 : vector<8x256xf32>
    %12 = vector.extract_strided_slice %0 {offsets = [0, 32], sizes = [8, 256], strides = [1, 1]} : vector<8x384xbf16> to vector<8x256xbf16>
    %c2 = arith.constant 2 : index
    %c0_8 = arith.constant 0 : index
    %c0_9 = arith.constant 0 : index
    %13 = vector.load %arg2[%c2, %c0_8, %c0_9] : memref<9x8x8xbf16, #tpu.memory_space<vmem>>, vector<1x8x8xbf16>
    %14 = vector.shape_cast %13 : vector<1x8x8xbf16> to vector<8x8xbf16>
    %cst_10 = arith.constant dense<0.000000e+00> : vector<8x256xf32>
    %15 = tpu.matmul %14, %12, %cst_10 {dimension_numbers = #tpu.dot_dimension_numbers<[1], [0], [0], [1], [0, 0, 1, 1], [], []>} : vector<8x8xbf16>, vector<8x256xbf16>, vector<8x256xf32> -> vector<8x256xf32>
    %16 = arith.addf %11, %15 : vector<8x256xf32>
    %17 = vector.extract_strided_slice %0 {offsets = [0, 48], sizes = [8, 256], strides = [1, 1]} : vector<8x384xbf16> to vector<8x256xbf16>
    %c3 = arith.constant 3 : index
    %c0_11 = arith.constant 0 : index
    %c0_12 = arith.constant 0 : index
    %18 = vector.load %arg2[%c3, %c0_11, %c0_12] : memref<9x8x8xbf16, #tpu.memory_space<vmem>>, vector<1x8x8xbf16>
    %19 = vector.shape_cast %18 : vector<1x8x8xbf16> to vector<8x8xbf16>
    %cst_13 = arith.constant dense<0.000000e+00> : vector<8x256xf32>
    %20 = tpu.matmul %19, %17, %cst_13 {dimension_numbers = #tpu.dot_dimension_numbers<[1], [0], [0], [1], [0, 0, 1, 1], [], []>} : vector<8x8xbf16>, vector<8x256xbf16>, vector<8x256xf32> -> vector<8x256xf32>
    %21 = arith.addf %16, %20 : vector<8x256xf32>
    %22 = vector.extract_strided_slice %0 {offsets = [0, 64], sizes = [8, 256], strides = [1, 1]} : vector<8x384xbf16> to vector<8x256xbf16>
    %c4 = arith.constant 4 : index
    %c0_14 = arith.constant 0 : index
    %c0_15 = arith.constant 0 : index
    %23 = vector.load %arg2[%c4, %c0_14, %c0_15] : memref<9x8x8xbf16, #tpu.memory_space<vmem>>, vector<1x8x8xbf16>
    %24 = vector.shape_cast %23 : vector<1x8x8xbf16> to vector<8x8xbf16>
    %cst_16 = arith.constant dense<0.000000e+00> : vector<8x256xf32>
    %25 = tpu.matmul %24, %22, %cst_16 {dimension_numbers = #tpu.dot_dimension_numbers<[1], [0], [0], [1], [0, 0, 1, 1], [], []>} : vector<8x8xbf16>, vector<8x256xbf16>, vector<8x256xf32> -> vector<8x256xf32>
    %26 = arith.addf %21, %25 : vector<8x256xf32>
    %27 = vector.extract_strided_slice %0 {offsets = [0, 80], sizes = [8, 256], strides = [1, 1]} : vector<8x384xbf16> to vector<8x256xbf16>
    %c5 = arith.constant 5 : index
    %c0_17 = arith.constant 0 : index
    %c0_18 = arith.constant 0 : index
    %28 = vector.load %arg2[%c5, %c0_17, %c0_18] : memref<9x8x8xbf16, #tpu.memory_space<vmem>>, vector<1x8x8xbf16>
    %29 = vector.shape_cast %28 : vector<1x8x8xbf16> to vector<8x8xbf16>
    %cst_19 = arith.constant dense<0.000000e+00> : vector<8x256xf32>
    %30 = tpu.matmul %29, %27, %cst_19 {dimension_numbers = #tpu.dot_dimension_numbers<[1], [0], [0], [1], [0, 0, 1, 1], [], []>} : vector<8x8xbf16>, vector<8x256xbf16>, vector<8x256xf32> -> vector<8x256xf32>
    %31 = arith.addf %26, %30 : vector<8x256xf32>
    %32 = vector.extract_strided_slice %0 {offsets = [0, 96], sizes = [8, 256], strides = [1, 1]} : vector<8x384xbf16> to vector<8x256xbf16>
    %c6 = arith.constant 6 : index
    %c0_20 = arith.constant 0 : index
    %c0_21 = arith.constant 0 : index
    %33 = vector.load %arg2[%c6, %c0_20, %c0_21] : memref<9x8x8xbf16, #tpu.memory_space<vmem>>, vector<1x8x8xbf16>
    %34 = vector.shape_cast %33 : vector<1x8x8xbf16> to vector<8x8xbf16>
    %cst_22 = arith.constant dense<0.000000e+00> : vector<8x256xf32>
    %35 = tpu.matmul %34, %32, %cst_22 {dimension_numbers = #tpu.dot_dimension_numbers<[1], [0], [0], [1], [0, 0, 1, 1], [], []>} : vector<8x8xbf16>, vector<8x256xbf16>, vector<8x256xf32> -> vector<8x256xf32>
    %36 = arith.addf %31, %35 : vector<8x256xf32>
    %37 = vector.extract_strided_slice %0 {offsets = [0, 112], sizes = [8, 256], strides = [1, 1]} : vector<8x384xbf16> to vector<8x256xbf16>
    %c7 = arith.constant 7 : index
    %c0_23 = arith.constant 0 : index
    %c0_24 = arith.constant 0 : index
    %38 = vector.load %arg2[%c7, %c0_23, %c0_24] : memref<9x8x8xbf16, #tpu.memory_space<vmem>>, vector<1x8x8xbf16>
    %39 = vector.shape_cast %38 : vector<1x8x8xbf16> to vector<8x8xbf16>
    %cst_25 = arith.constant dense<0.000000e+00> : vector<8x256xf32>
    %40 = tpu.matmul %39, %37, %cst_25 {dimension_numbers = #tpu.dot_dimension_numbers<[1], [0], [0], [1], [0, 0, 1, 1], [], []>} : vector<8x8xbf16>, vector<8x256xbf16>, vector<8x256xf32> -> vector<8x256xf32>
    %41 = arith.addf %36, %40 : vector<8x256xf32>
    %42 = vector.extract_strided_slice %0 {offsets = [0, 128], sizes = [8, 256], strides = [1, 1]} : vector<8x384xbf16> to vector<8x256xbf16>
    %c8 = arith.constant 8 : index
    %c0_26 = arith.constant 0 : index
    %c0_27 = arith.constant 0 : index
    %43 = vector.load %arg2[%c8, %c0_26, %c0_27] : memref<9x8x8xbf16, #tpu.memory_space<vmem>>, vector<1x8x8xbf16>
    %44 = vector.shape_cast %43 : vector<1x8x8xbf16> to vector<8x8xbf16>
    %cst_28 = arith.constant dense<0.000000e+00> : vector<8x256xf32>
    %45 = tpu.matmul %44, %42, %cst_28 {dimension_numbers = #tpu.dot_dimension_numbers<[1], [0], [0], [1], [0, 0, 1, 1], [], []>} : vector<8x8xbf16>, vector<8x256xbf16>, vector<8x256xf32> -> vector<8x256xf32>
    %46 = arith.addf %41, %45 : vector<8x256xf32>
    %c0_29 = arith.constant 0 : index
    %c0_30 = arith.constant 0 : index
    %47 = vector.load %arg3[%c0_29, %c0_30] : memref<8x1xf32, #tpu.memory_space<vmem>>, vector<8x1xf32>
    %48 = vector.broadcast %47 : vector<8x1xf32> to vector<8x256xf32>
    %49 = arith.addf %46, %48 : vector<8x256xf32>
    %cst_31 = arith.constant 0.000000e+00 : f32
    %50 = vector.broadcast %cst_31 : f32 to vector<8x256xf32>
    %51 = arith.maximumf %49, %50 : vector<8x256xf32>
    %c0_32 = arith.constant 0 : index
    %c0_33 = arith.constant 0 : index
    %52 = vector.load %arg4[%c0_32, %c0_33] : memref<8x256xf32, #tpu.memory_space<vmem>>, vector<8x256xf32>
    tpu.vector_store %arg4[%c0_32, %c0_33], %51 {strides = array<i32>} : memref<8x256xf32, #tpu.memory_space<vmem>>, vector<8x256xf32>,
    return
  }
  func.func @transform_0(%arg0: i32) -> (i32, i32) {
    %c0_i32 = arith.constant 0 : i32
    %c0_i32_0 = arith.constant 0 : i32
    return %arg0, %c0_i32 : i32, i32
  }
  func.func @transform_1(%arg0: i32) -> (i32, i32, i32) {
    %c0_i32 = arith.constant 0 : i32
    %c0_i32_0 = arith.constant 0 : i32
    %c0_i32_1 = arith.constant 0 : i32
    %c0_i32_2 = arith.constant 0 : i32
    return %c0_i32, %c0_i32_0, %c0_i32_1 : i32, i32, i32
  }
  func.func @transform_2(%arg0: i32) -> (i32, i32) {
    %c0_i32 = arith.constant 0 : i32
    %c0_i32_0 = arith.constant 0 : i32
    %c0_i32_1 = arith.constant 0 : i32
    return %c0_i32, %c0_i32_0 : i32, i32
  }
  func.func @transform_3(%arg0: i32) -> (i32, i32) {
    %c0_i32 = arith.constant 0 : i32
    %c0_i32_0 = arith.constant 0 : i32
    return %arg0, %c0_i32 : i32, i32
  }
}

</mosaic_0001>

<llo_original>
// kernel: tile.8
$region0: #{tile.8}
  #allocation0 [shape = 's32[1]{0}', space=sflag, size = 0x4, scoped, tag = 'scoped memory for tile.8']
  %s0 = inlined_call_operand.vmem [shape: f32[4], index: 0, kind: input, shape index: {}]
  %s1 = inlined_call_operand.vmem [shape: f32[2,4], index: 1, kind: output, shape index: {}]
  // Predicated region
  $region2: #{tile.8} parent=0 // pred_check
    _
  $region3: #{tile.8} parent=0 // pred_check_branch
    %3 = sbr.rel (0) target = $region5
  $region4: #{tile.8} parent=0 // pred_region
    _
  $region5: #{tile.8} parent=0 // pred_fallthru
    _
  %v4 = vld [vmem:[%s0] ss:$0 sm:$0xff]
  %5 = vst [vmem:[%s1] sm:$0x3] %v4

// kernel: tile.0
$region0: #{tile.0}
  %s0 = inlined_call_operand.vmem [shape: f32[2,4], index: 0, kind: input, shape index: {}]
  %s1 = inlined_call_operand.vmem [shape: f32[8,1], index: 1, kind: output, shape index: {}]
  $region1: #{tile.0} parent=0
    #allocation0 [shape = 'u8[4096]{0}', space=vmem, size = 0x1000, scoped, tag = 'scoped mem for input reshape']
    %s3 = sshllo.u32 0, 2
    %v4 = vld [vmem:[%s0] sm:%s3]
    %5 = vst [vmem:[#allocation0] sm:%s3] %v4
    %v6 = vld [vmem:[#allocation0] sm:$0x3]
    %vm7 = vcmask 7168
    %8 = vst.msk [vmem:[%s1] ss:$4 sm:$0x3] %vm7, %v6
    %v9 = vld [vmem:[#allocation0] sm:$0x3]
    %10 = vrot.lane.b32.xlu0 %v9, 127
    %v11 = vpop.permute.xlu0 %10
    %vm12 = vcmask 7168
    %s13 = scalar_lea.vmem %s1, 1
    %14 = vst.msk [vmem:[%s13] ss:$4 sm:$0x3] %vm12, %v11
    %v15 = vld [vmem:[#allocation0] sm:$0x3]
    %16 = vrot.lane.b32.xlu0 %v15, 126
    %v17 = vpop.permute.xlu0 %16
    %vm18 = vcmask 7168
    %s19 = scalar_lea.vmem %s1, 2
    %20 = vst.msk [vmem:[%s19] ss:$4 sm:$0x3] %vm18, %v17
    %v21 = vld [vmem:[#allocation0] sm:$0x3]
    %22 = vrot.lane.b32.xlu0 %v21, 125
    %v23 = vpop.permute.xlu0 %22
    %vm24 = vcmask 7168
    %s25 = scalar_lea.vmem %s1, 3
    %26 = vst.msk [vmem:[%s25] ss:$4 sm:$0x3] %vm24, %v23

// kernel: tcn_forward.1
$region0: #{tcn_forward.1}
  #allocation0 [shape = 'u32[]', space=smem, size = 0x4, offset = 0x4, fixed_abs, tag = 'smem constant byte address 0x4 - core index']
  #allocation1 [shape = 'u32[144,128]{1,0:T(1,128)}', space=vmem, size = 0x12000, scoped, tag = 'internal scratch']
  %s0 = inlined_call_operand.vmem [shape: bf16[8,384], index: 0, kind: input, shape index: {}]
  %s1 = inlined_call_operand.vmem [shape: bf16[9,8,8], index: 1, kind: input, shape index: {}]
  %s2 = inlined_call_operand.vmem [shape: f32[8,1], index: 2, kind: input, shape index: {}]
  %s3 = inlined_call_operand.vmem [shape: f32[8,256], index: 3, kind: output, shape index: {}]
  %s4 = sld [smem:[#allocation0]]
  $region22: #{tcn_forward.1} parent=0
    _
  %s6 = ssub.s32 1, %s4
  %s7 = scalar_select 0, %s6, %s4
  // Predicated region
  $region2: #{tcn_forward.1} parent=0 // pred_check
    _
  $region3: #{tcn_forward.1} parent=0 // pred_check_branch
    %9 = sbr.rel (0) target = $region5
  $region4: #{tcn_forward.1} parent=0 // pred_region
    _
  $region5: #{tcn_forward.1} parent=0 // pred_fallthru
    _
  // Predicated region
  $region6: #{tcn_forward.1} parent=0 // pred_check
    _
  $region7: #{tcn_forward.1} parent=0 // pred_check_branch
    %11 = sbr.rel (0) target = $region9
  $region8: #{tcn_forward.1} parent=0 // pred_region
    _
  $region9: #{tcn_forward.1} parent=0 // pred_fallthru
    _
  // Predicated region
  $region10: #{tcn_forward.1} parent=0 // pred_check
    _
  $region11: #{tcn_forward.1} parent=0 // pred_check_branch
    %13 = sbr.rel (0) target = $region13
  $region12: #{tcn_forward.1} parent=0 // pred_region
    _
  $region13: #{tcn_forward.1} parent=0 // pred_fallthru
    _
  %v15 = vld [vmem:[%s0] sm:$0xff]
  %v16 = vld [vmem:[%s0 + $0x8] sm:$0xf]
  %v17 = vld [vmem:[%s1] sm:$0xf]
  %s18 = scalar_lea.vmem %s1, 4
  %v19 = vld [vmem:[%s18] sm:$0xf]
  %v22 = vunpack.c.l.b16 %v15
  %v23 = vunpack.c.h.b16 %v15
  %v24 = vunpack.c.l.b16 %v16
  %v25 = vpack.c.b16 %v22, %v22
  %v26 = vpack.c.b16 %v23, %v23
  %v27 = vpack.c.b16 %v24, %v24
  %28 = vrot.lane.b32.xlu0 %v25, 112
  %v29 = vpop.permute.xlu0 %28
  %30 = vrot.lane.b32.xlu0 %v26, 112
  %v31 = vpop.permute.xlu0 %30
  %32 = vrot.lane.b32.xlu0 %v27, 112
  %v33 = vpop.permute.xlu0 %32
  %vm34 = vcmask 916480
  %v35 = vsel %vm34, %v29, %v31
  %v36 = vsel %vm34, %v31, %v33
  %vm37 = vcmask 64512
  %v39 = vsel %vm37, %v19, 0
  %vm41 = vcmask 1043456
  %v43 = vsel %vm41, %v35, 0
  %v46 = vsel %vm41, %v36, 0
  %48 = vmatprep.subr.bf16.mxu0 %v46
  %49 = vmatpush1.bf16.msra.mxu0 %v43
  %50 = vmatprep.subr.bf16.mxu0 0
  %51 = vmatpush1.bf16.msra.mxu0 0
  %52 = vmatprep.subr.bf16.mxu0 0
  %53 = vmatpush1.bf16.msra.mxu0 0
  %54 = vmatprep.subr.bf16.mxu0 0
  %55 = vmatpush1.bf16.msra.mxu0 0
  %56 = vmatprep.subr.bf16.mxu0 0
  %57 = vmatpush1.bf16.msra.mxu0 0
  %58 = vmatprep.subr.bf16.mxu0 0
  %59 = vmatpush1.bf16.msra.mxu0 0
  %60 = vmatprep.subr.bf16.mxu0 0
  %61 = vmatpush1.bf16.msra.mxu0 0
  %62 = vmatprep.subr.bf16.mxu0 0
  %63 = vmatpush1.bf16.msra.mxu0 0
  %64 = vmatprep.subr.bf16.mxu0 0
  %65 = vmatpush1.bf16.msra.mxu0 0
  %66 = vmatprep.subr.bf16.mxu0 0
  %67 = vmatpush1.bf16.msra.mxu0 0
  %68 = vmatprep.subr.bf16.mxu0 0
  %69 = vmatpush1.bf16.msra.mxu0 0
  %70 = vmatprep.subr.bf16.mxu0 0
  %71 = vmatpush1.bf16.msra.mxu0 0
  %72 = vmatprep.subr.bf16.mxu0 0
  %73 = vmatpush1.bf16.msra.mxu0 0
  %74 = vmatprep.subr.bf16.mxu0 0
  %75 = vmatpush1.bf16.msra.mxu0 0
  %76 = vmatprep.subr.bf16.mxu0 0
  %77 = vmatpush1.bf16.msra.mxu0 0
  %78 = vmatprep.subr.bf16.mxu0 0
  %79 = vmatpush1.bf16.msra.mxu0 0
  %80 = vmatprep.mubr.bf16.mxu0 0
  %81 = vmatmul.mubr.bf16.gmra.mrb[0].mxu0 %v39
  %v82 = vpop.f32.mrb[0].mxu0
  %v83 = vadd.f32 0.0, %v82
  %v84 = vpop.f32.mrb[0].mxu0
  %v85 = vadd.f32 0.0, %v84
  %v86 = vpop.f32.mrb[0].mxu0
  %v87 = vpop.f32.mrb[0].mxu0
  %88 = vdwg.mxu0
  %v90 = vsel %vm37, %v17, 0
  %v93 = vsel %vm41, %v25, 0
  %v96 = vsel %vm41, %v26, 0
  %98 = vmatprep.subr.bf16.mxu0 %v96
  %99 = vmatpush1.bf16.msra.mxu0 %v93
  %100 = vmatprep.subr.bf16.mxu0 0
  %101 = vmatpush1.bf16.msra.mxu0 0
  %102 = vmatprep.subr.bf16.mxu0 0
  %103 = vmatpush1.bf16.msra.mxu0 0
  %104 = vmatprep.subr.bf16.mxu0 0
  %105 = vmatpush1.bf16.msra.mxu0 0
  %106 = vmatprep.subr.bf16.mxu0 0
  %107 = vmatpush1.bf16.msra.mxu0 0
  %108 = vmatprep.subr.bf16.mxu0 0
  %109 = vmatpush1.bf16.msra.mxu0 0
  %110 = vmatprep.subr.bf16.mxu0 0
  %111 = vmatpush1.bf16.msra.mxu0 0
  %112 = vmatprep.subr.bf16.mxu0 0
  %113 = vmatpush1.bf16.msra.mxu0 0
  %114 = vmatprep.subr.bf16.mxu0 0
  %115 = vmatpush1.bf16.msra.mxu0 0
  %116 = vmatprep.subr.bf16.mxu0 0
  %117 = vmatpush1.bf16.msra.mxu0 0
  %118 = vmatprep.subr.bf16.mxu0 0
  %119 = vmatpush1.bf16.msra.mxu0 0
  %120 = vmatprep.subr.bf16.mxu0 0
  %121 = vmatpush1.bf16.msra.mxu0 0
  %122 = vmatprep.subr.bf16.mxu0 0
  %123 = vmatpush1.bf16.msra.mxu0 0
  %124 = vmatprep.subr.bf16.mxu0 0
  %125 = vmatpush1.bf16.msra.mxu0 0
  %126 = vmatprep.subr.bf16.mxu0 0
  %127 = vmatpush1.bf16.msra.mxu0 0
  %128 = vmatprep.subr.bf16.mxu0 0
  %129 = vmatpush1.bf16.msra.mxu0 0
  %130 = vmatprep.mubr.bf16.mxu0 0
  %131 = vmatmul.mubr.bf16.gmra.mrb[0].mxu0 %v90
  %v132 = vpop.f32.mrb[0].mxu0
  %v133 = vadd.f32 %v83, %v132
  %v134 = vpop.f32.mrb[0].mxu0
  %v135 = vadd.f32 %v85, %v134
  %v136 = vpop.f32.mrb[0].mxu0
  %v137 = vpop.f32.mrb[0].mxu0
  %138 = vdwg.mxu0
  %s139 = scalar_lea.vmem %s1, 8
  %v140 = vld [vmem:[%s139] sm:$0xf]
  %141 = vrot.lane.b32.xlu0 %v25, 96
  %v142 = vpop.permute.xlu0 %141
  %143 = vrot.lane.b32.xlu0 %v26, 96
  %v144 = vpop.permute.xlu0 %143
  %145 = vrot.lane.b32.xlu0 %v27, 96
  %v146 = vpop.permute.xlu0 %145
  %vm147 = vcmask 785408
  %v148 = vsel %vm147, %v142, %v144
  %v149 = vsel %vm147, %v144, %v146
  %v151 = vsel %vm37, %v140, 0
  %v154 = vsel %vm41, %v148, 0
  %v157 = vsel %vm41, %v149, 0
  %159 = vmatprep.subr.bf16.mxu0 %v157
  %160 = vmatpush1.bf16.msra.mxu0 %v154
  %161 = vmatprep.subr.bf16.mxu0 0
  %162 = vmatpush1.bf16.msra.mxu0 0
  %163 = vmatprep.subr.bf16.mxu0 0
  %164 = vmatpush1.bf16.msra.mxu0 0
  %165 = vmatprep.subr.bf16.mxu0 0
  %166 = vmatpush1.bf16.msra.mxu0 0
  %167 = vmatprep.subr.bf16.mxu0 0
  %168 = vmatpush1.bf16.msra.mxu0 0
  %169 = vmatprep.subr.bf16.mxu0 0
  %170 = vmatpush1.bf16.msra.mxu0 0
  %171 = vmatprep.subr.bf16.mxu0 0
  %172 = vmatpush1.bf16.msra.mxu0 0
  %173 = vmatprep.subr.bf16.mxu0 0
  %174 = vmatpush1.bf16.msra.mxu0 0
  %175 = vmatprep.subr.bf16.mxu0 0
  %176 = vmatpush1.bf16.msra.mxu0 0
  %177 = vmatprep.subr.bf16.mxu0 0
  %178 = vmatpush1.bf16.msra.mxu0 0
  %179 = vmatprep.subr.bf16.mxu0 0
  %180 = vmatpush1.bf16.msra.mxu0 0
  %181 = vmatprep.subr.bf16.mxu0 0
  %182 = vmatpush1.bf16.msra.mxu0 0
  %183 = vmatprep.subr.bf16.mxu0 0
  %184 = vmatpush1.bf16.msra.mxu0 0
  %185 = vmatprep.subr.bf16.mxu0 0
  %186 = vmatpush1.bf16.msra.mxu0 0
  %187 = vmatprep.subr.bf16.mxu0 0
  %188 = vmatpush1.bf16.msra.mxu0 0
  %189 = vmatprep.subr.bf16.mxu0 0
  %190 = vmatpush1.bf16.msra.mxu0 0
  %191 = vmatprep.mubr.bf16.mxu0 0
  %192 = vmatmul.mubr.bf16.gmra.mrb[0].mxu0 %v151
  %v193 = vpop.f32.mrb[0].mxu0
  %v194 = vadd.f32 0.0, %v193
  %v195 = vpop.f32.mrb[0].mxu0
  %v196 = vadd.f32 0.0, %v195
  %v197 = vpop.f32.mrb[0].mxu0
  %v198 = vpop.f32.mrb[0].mxu0
  %199 = vdwg.mxu0
  %v200 = vadd.f32 %v133, %v194
  %v201 = vadd.f32 %v135, %v196
  %s202 = scalar_lea.vmem %s1, 12
  %v203 = vld [vmem:[%s202] sm:$0xf]
  %204 = vrot.lane.b32.xlu0 %v25, 80
  %v205 = vpop.permute.xlu0 %204
  %206 = vrot.lane.b32.xlu0 %v26, 80
  %v207 = vpop.permute.xlu0 %206
  %208 = vrot.lane.b32.xlu0 %v27, 80
  %v209 = vpop.permute.xlu0 %208
  %vm210 = vcmask 654336
  %v211 = vsel %vm210, %v205, %v207
  %v212 = vsel %vm210, %v207, %v209
  %v214 = vsel %vm37, %v203, 0
  %v217 = vsel %vm41, %v211, 0
  %v220 = vsel %vm41, %v212, 0
  %222 = vmatprep.subr.bf16.mxu0 %v220
  %223 = vmatpush1.bf16.msra.mxu0 %v217
  %224 = vmatprep.subr.bf16.mxu0 0
  %225 = vmatpush1.bf16.msra.mxu0 0
  %226 = vmatprep.subr.bf16.mxu0 0
  %227 = vmatpush1.bf16.msra.mxu0 0
  %228 = vmatprep.subr.bf16.mxu0 0
  %229 = vmatpush1.bf16.msra.mxu0 0
  %230 = vmatprep.subr.bf16.mxu0 0
  %231 = vmatpush1.bf16.msra.mxu0 0
  %232 = vmatprep.subr.bf16.mxu0 0
  %233 = vmatpush1.bf16.msra.mxu0 0
  %234 = vmatprep.subr.bf16.mxu0 0
  %235 = vmatpush1.bf16.msra.mxu0 0
  %236 = vmatprep.subr.bf16.mxu0 0
  %237 = vmatpush1.bf16.msra.mxu0 0
  %238 = vmatprep.subr.bf16.mxu0 0
  %239 = vmatpush1.bf16.msra.mxu0 0
  %240 = vmatprep.subr.bf16.mxu0 0
  %241 = vmatpush1.bf16.msra.mxu0 0
  %242 = vmatprep.subr.bf16.mxu0 0
  %243 = vmatpush1.bf16.msra.mxu0 0
  %244 = vmatprep.subr.bf16.mxu0 0
  %245 = vmatpush1.bf16.msra.mxu0 0
  %246 = vmatprep.subr.bf16.mxu0 0
  %247 = vmatpush1.bf16.msra.mxu0 0
  %248 = vmatprep.subr.bf16.mxu0 0
  %249 = vmatpush1.bf16.msra.mxu0 0
  %250 = vmatprep.subr.bf16.mxu0 0
  %251 = vmatpush1.bf16.msra.mxu0 0
  %252 = vmatprep.subr.bf16.mxu0 0
  %253 = vmatpush1.bf16.msra.mxu0 0
  %254 = vmatprep.mubr.bf16.mxu0 0
  %255 = vmatmul.mubr.bf16.gmra.mrb[0].mxu0 %v214
  %v256 = vpop.f32.mrb[0].mxu0
  %v257 = vadd.f32 0.0, %v256
  %v258 = vpop.f32.mrb[0].mxu0
  %v259 = vadd.f32 0.0, %v258
  %v260 = vpop.f32.mrb[0].mxu0
  %v261 = vpop.f32.mrb[0].mxu0
  %262 = vdwg.mxu0
  %v263 = vadd.f32 %v200, %v257
  %v264 = vadd.f32 %v201, %v259
  %s265 = scalar_lea.vmem %s1, 16
  %v266 = vld [vmem:[%s265] sm:$0xf]
  %267 = vrot.lane.b32.xlu0 %v25, 64
  %v268 = vpop.permute.xlu0 %267
  %269 = vrot.lane.b32.xlu0 %v26, 64
  %v270 = vpop.permute.xlu0 %269
  %271 = vrot.lane.b32.xlu0 %v27, 64
  %v272 = vpop.permute.xlu0 %271
  %vm273 = vcmask 523264
  %v274 = vsel %vm273, %v268, %v270
  %v275 = vsel %vm273, %v270, %v272
  %v277 = vsel %vm37, %v266, 0
  %v280 = vsel %vm41, %v274, 0
  %v283 = vsel %vm41, %v275, 0
  %285 = vmatprep.subr.bf16.mxu0 %v283
  %286 = vmatpush1.bf16.msra.mxu0 %v280
  %287 = vmatprep.subr.bf16.mxu0 0
  %288 = vmatpush1.bf16.msra.mxu0 0
  %289 = vmatprep.subr.bf16.mxu0 0
  %290 = vmatpush1.bf16.msra.mxu0 0
  %291 = vmatprep.subr.bf16.mxu0 0
  %292 = vmatpush1.bf16.msra.mxu0 0
  %293 = vmatprep.subr.bf16.mxu0 0
  %294 = vmatpush1.bf16.msra.mxu0 0
  %295 = vmatprep.subr.bf16.mxu0 0
  %296 = vmatpush1.bf16.msra.mxu0 0
  %297 = vmatprep.subr.bf16.mxu0 0
  %298 = vmatpush1.bf16.msra.mxu0 0
  %299 = vmatprep.subr.bf16.mxu0 0
  %300 = vmatpush1.bf16.msra.mxu0 0
  %301 = vmatprep.subr.bf16.mxu0 0
  %302 = vmatpush1.bf16.msra.mxu0 0
  %303 = vmatprep.subr.bf16.mxu0 0
  %304 = vmatpush1.bf16.msra.mxu0 0
  %305 = vmatprep.subr.bf16.mxu0 0
  %306 = vmatpush1.bf16.msra.mxu0 0
  %307 = vmatprep.subr.bf16.mxu0 0
  %308 = vmatpush1.bf16.msra.mxu0 0
  %309 = vmatprep.subr.bf16.mxu0 0
  %310 = vmatpush1.bf16.msra.mxu0 0
  %311 = vmatprep.subr.bf16.mxu0 0
  %312 = vmatpush1.bf16.msra.mxu0 0
  %313 = vmatprep.subr.bf16.mxu0 0
  %314 = vmatpush1.bf16.msra.mxu0 0
  %315 = vmatprep.subr.bf16.mxu0 0
  %316 = vmatpush1.bf16.msra.mxu0 0
  %317 = vmatprep.mubr.bf16.mxu0 0
  %318 = vmatmul.mubr.bf16.gmra.mrb[0].mxu0 %v277
  %v319 = vpop.f32.mrb[0].mxu0
  %v320 = vadd.f32 0.0, %v319
  %v321 = vpop.f32.mrb[0].mxu0
  %v322 = vadd.f32 0.0, %v321
  %v323 = vpop.f32.mrb[0].mxu0
  %v324 = vpop.f32.mrb[0].mxu0
  %325 = vdwg.mxu0
  %v326 = vadd.f32 %v263, %v320
  %v327 = vadd.f32 %v264, %v322
  %s328 = scalar_lea.vmem %s1, 20
  %v329 = vld [vmem:[%s328] sm:$0xf]
  %330 = vrot.lane.b32.xlu0 %v25, 48
  %v331 = vpop.permute.xlu0 %330
  %332 = vrot.lane.b32.xlu0 %v26, 48
  %v333 = vpop.permute.xlu0 %332
  %334 = vrot.lane.b32.xlu0 %v27, 48
  %v335 = vpop.permute.xlu0 %334
  %vm336 = vcmask 392192
  %v337 = vsel %vm336, %v331, %v333
  %v338 = vsel %vm336, %v333, %v335
  %v340 = vsel %vm37, %v329, 0
  %v343 = vsel %vm41, %v337, 0
  %v346 = vsel %vm41, %v338, 0
  %348 = vmatprep.subr.bf16.mxu0 %v346
  %349 = vmatpush1.bf16.msra.mxu0 %v343
  %350 = vmatprep.subr.bf16.mxu0 0
  %351 = vmatpush1.bf16.msra.mxu0 0
  %352 = vmatprep.subr.bf16.mxu0 0
  %353 = vmatpush1.bf16.msra.mxu0 0
  %354 = vmatprep.subr.bf16.mxu0 0
  %355 = vmatpush1.bf16.msra.mxu0 0
  %356 = vmatprep.subr.bf16.mxu0 0
  %357 = vmatpush1.bf16.msra.mxu0 0
  %358 = vmatprep.subr.bf16.mxu0 0
  %359 = vmatpush1.bf16.msra.mxu0 0
  %360 = vmatprep.subr.bf16.mxu0 0
  %361 = vmatpush1.bf16.msra.mxu0 0
  %362 = vmatprep.subr.bf16.mxu0 0
  %363 = vmatpush1.bf16.msra.mxu0 0
  %364 = vmatprep.subr.bf16.mxu0 0
  %365 = vmatpush1.bf16.msra.mxu0 0
  %366 = vmatprep.subr.bf16.mxu0 0
  %367 = vmatpush1.bf16.msra.mxu0 0
  %368 = vmatprep.subr.bf16.mxu0 0
  %369 = vmatpush1.bf16.msra.mxu0 0
  %370 = vmatprep.subr.bf16.mxu0 0
  %371 = vmatpush1.bf16.msra.mxu0 0
  %372 = vmatprep.subr.bf16.mxu0 0
  %373 = vmatpush1.bf16.msra.mxu0 0
  %374 = vmatprep.subr.bf16.mxu0 0
  %375 = vmatpush1.bf16.msra.mxu0 0
  %376 = vmatprep.subr.bf16.mxu0 0
  %377 = vmatpush1.bf16.msra.mxu0 0
  %378 = vmatprep.subr.bf16.mxu0 0
  %379 = vmatpush1.bf16.msra.mxu0 0
  %380 = vmatprep.mubr.bf16.mxu0 0
  %381 = vmatmul.mubr.bf16.gmra.mrb[0].mxu0 %v340
  %v382 = vpop.f32.mrb[0].mxu0
  %v383 = vadd.f32 0.0, %v382
  %v384 = vpop.f32.mrb[0].mxu0
  %v385 = vadd.f32 0.0, %v384
  %v386 = vpop.f32.mrb[0].mxu0
  %v387 = vpop.f32.mrb[0].mxu0
  %388 = vdwg.mxu0
  %v389 = vadd.f32 %v326, %v383
  %v390 = vadd.f32 %v327, %v385
  %s391 = scalar_lea.vmem %s1, 24
  %v392 = vld [vmem:[%s391] sm:$0xf]
  %393 = vrot.lane.b32.xlu0 %v25, 32
  %v394 = vpop.permute.xlu0 %393
  %395 = vrot.lane.b32.xlu0 %v26, 32
  %v396 = vpop.permute.xlu0 %395
  %397 = vrot.lane.b32.xlu0 %v27, 32
  %v398 = vpop.permute.xlu0 %397
  %vm399 = vcmask 261120
  %v400 = vsel %vm399, %v394, %v396
  %v401 = vsel %vm399, %v396, %v398
  %v403 = vsel %vm37, %v392, 0
  %v406 = vsel %vm41, %v400, 0
  %v409 = vsel %vm41, %v401, 0
  %411 = vmatprep.subr.bf16.mxu0 %v409
  %412 = vmatpush1.bf16.msra.mxu0 %v406
  %413 = vmatprep.subr.bf16.mxu0 0
  %414 = vmatpush1.bf16.msra.mxu0 0
  %415 = vmatprep.subr.bf16.mxu0 0
  %416 = vmatpush1.bf16.msra.mxu0 0
  %417 = vmatprep.subr.bf16.mxu0 0
  %418 = vmatpush1.bf16.msra.mxu0 0
  %419 = vmatprep.subr.bf16.mxu0 0
  %420 = vmatpush1.bf16.msra.mxu0 0
  %421 = vmatprep.subr.bf16.mxu0 0
  %422 = vmatpush1.bf16.msra.mxu0 0
  %423 = vmatprep.subr.bf16.mxu0 0
  %424 = vmatpush1.bf16.msra.mxu0 0
  %425 = vmatprep.subr.bf16.mxu0 0
  %426 = vmatpush1.bf16.msra.mxu0 0
  %427 = vmatprep.subr.bf16.mxu0 0
  %428 = vmatpush1.bf16.msra.mxu0 0
  %429 = vmatprep.subr.bf16.mxu0 0
  %430 = vmatpush1.bf16.msra.mxu0 0
  %431 = vmatprep.subr.bf16.mxu0 0
  %432 = vmatpush1.bf16.msra.mxu0 0
  %433 = vmatprep.subr.bf16.mxu0 0
  %434 = vmatpush1.bf16.msra.mxu0 0
  %435 = vmatprep.subr.bf16.mxu0 0
  %436 = vmatpush1.bf16.msra.mxu0 0
  %437 = vmatprep.subr.bf16.mxu0 0
  %438 = vmatpush1.bf16.msra.mxu0 0
  %439 = vmatprep.subr.bf16.mxu0 0
  %440 = vmatpush1.bf16.msra.mxu0 0
  %441 = vmatprep.subr.bf16.mxu0 0
  %442 = vmatpush1.bf16.msra.mxu0 0
  %443 = vmatprep.mubr.bf16.mxu0 0
  %444 = vmatmul.mubr.bf16.gmra.mrb[0].mxu0 %v403
  %v445 = vpop.f32.mrb[0].mxu0
  %v446 = vadd.f32 0.0, %v445
  %v447 = vpop.f32.mrb[0].mxu0
  %v448 = vadd.f32 0.0, %v447
  %v449 = vpop.f32.mrb[0].mxu0
  %v450 = vpop.f32.mrb[0].mxu0
  %451 = vdwg.mxu0
  %v452 = vadd.f32 %v389, %v446
  %v453 = vadd.f32 %v390, %v448
  %s454 = scalar_lea.vmem %s1, 28
  %v455 = vld [vmem:[%s454] sm:$0xf]
  %456 = vrot.lane.b32.xlu0 %v25, 16
  %v457 = vpop.permute.xlu0 %456
  %458 = vrot.lane.b32.xlu0 %v26, 16
  %v459 = vpop.permute.xlu0 %458
  %460 = vrot.lane.b32.xlu0 %v27, 16
  %v461 = vpop.permute.xlu0 %460
  %vm462 = vcmask 130048
  %v463 = vsel %vm462, %v457, %v459
  %v464 = vsel %vm462, %v459, %v461
  %v466 = vsel %vm37, %v455, 0
  %v469 = vsel %vm41, %v463, 0
  %v472 = vsel %vm41, %v464, 0
  %474 = vmatprep.subr.bf16.mxu0 %v472
  %475 = vmatpush1.bf16.msra.mxu0 %v469
  %476 = vmatprep.subr.bf16.mxu0 0
  %477 = vmatpush1.bf16.msra.mxu0 0
  %478 = vmatprep.subr.bf16.mxu0 0
  %479 = vmatpush1.bf16.msra.mxu0 0
  %480 = vmatprep.subr.bf16.mxu0 0
  %481 = vmatpush1.bf16.msra.mxu0 0
  %482 = vmatprep.subr.bf16.mxu0 0
  %483 = vmatpush1.bf16.msra.mxu0 0
  %484 = vmatprep.subr.bf16.mxu0 0
  %485 = vmatpush1.bf16.msra.mxu0 0
  %486 = vmatprep.subr.bf16.mxu0 0
  %487 = vmatpush1.bf16.msra.mxu0 0
  %488 = vmatprep.subr.bf16.mxu0 0
  %489 = vmatpush1.bf16.msra.mxu0 0
  %490 = vmatprep.subr.bf16.mxu0 0
  %491 = vmatpush1.bf16.msra.mxu0 0
  %492 = vmatprep.subr.bf16.mxu0 0
  %493 = vmatpush1.bf16.msra.mxu0 0
  %494 = vmatprep.subr.bf16.mxu0 0
  %495 = vmatpush1.bf16.msra.mxu0 0
  %496 = vmatprep.subr.bf16.mxu0 0
  %497 = vmatpush1.bf16.msra.mxu0 0
  %498 = vmatprep.subr.bf16.mxu0 0
  %499 = vmatpush1.bf16.msra.mxu0 0
  %500 = vmatprep.subr.bf16.mxu0 0
  %501 = vmatpush1.bf16.msra.mxu0 0
  %502 = vmatprep.subr.bf16.mxu0 0
  %503 = vmatpush1.bf16.msra.mxu0 0
  %504 = vmatprep.subr.bf16.mxu0 0
  %505 = vmatpush1.bf16.msra.mxu0 0
  %506 = vmatprep.mubr.bf16.mxu0 0
  %507 = vmatmul.mubr.bf16.gmra.mrb[0].mxu0 %v466
  %v508 = vpop.f32.mrb[0].mxu0
  %v509 = vadd.f32 0.0, %v508
  %v510 = vpop.f32.mrb[0].mxu0
  %v511 = vadd.f32 0.0, %v510
  %v512 = vpop.f32.mrb[0].mxu0
  %v513 = vpop.f32.mrb[0].mxu0
  %514 = vdwg.mxu0
  %v515 = vadd.f32 %v452, %v509
  %v516 = vadd.f32 %v453, %v511
  %s517 = scalar_lea.vmem %s1, 32
  %v518 = vld [vmem:[%s517] sm:$0xf]
  %v520 = vsel %vm37, %v518, 0
  %v523 = vsel %vm41, %v27, 0
  %525 = vmatprep.subr.bf16.mxu0 %v523
  %526 = vmatpush1.bf16.msra.mxu0 %v96
  %527 = vmatprep.subr.bf16.mxu0 0
  %528 = vmatpush1.bf16.msra.mxu0 0
  %529 = vmatprep.subr.bf16.mxu0 0
  %530 = vmatpush1.bf16.msra.mxu0 0
  %531 = vmatprep.subr.bf16.mxu0 0
  %532 = vmatpush1.bf16.msra.mxu0 0
  %533 = vmatprep.subr.bf16.mxu0 0
  %534 = vmatpush1.bf16.msra.mxu0 0
  %535 = vmatprep.subr.bf16.mxu0 0
  %536 = vmatpush1.bf16.msra.mxu0 0
  %537 = vmatprep.subr.bf16.mxu0 0
  %538 = vmatpush1.bf16.msra.mxu0 0
  %539 = vmatprep.subr.bf16.mxu0 0
  %540 = vmatpush1.bf16.msra.mxu0 0
  %541 = vmatprep.subr.bf16.mxu0 0
  %542 = vmatpush1.bf16.msra.mxu0 0
  %543 = vmatprep.subr.bf16.mxu0 0
  %544 = vmatpush1.bf16.msra.mxu0 0
  %545 = vmatprep.subr.bf16.mxu0 0
  %546 = vmatpush1.bf16.msra.mxu0 0
  %547 = vmatprep.subr.bf16.mxu0 0
  %548 = vmatpush1.bf16.msra.mxu0 0
  %549 = vmatprep.subr.bf16.mxu0 0
  %550 = vmatpush1.bf16.msra.mxu0 0
  %551 = vmatprep.subr.bf16.mxu0 0
  %552 = vmatpush1.bf16.msra.mxu0 0
  %553 = vmatprep.subr.bf16.mxu0 0
  %554 = vmatpush1.bf16.msra.mxu0 0
  %555 = vmatprep.subr.bf16.mxu0 0
  %556 = vmatpush1.bf16.msra.mxu0 0
  %557 = vmatprep.mubr.bf16.mxu0 0
  %558 = vmatmul.mubr.bf16.gmra.mrb[0].mxu0 %v520
  %v559 = vpop.f32.mrb[0].mxu0
  %v560 = vadd.f32 0.0, %v559
  %v561 = vpop.f32.mrb[0].mxu0
  %v562 = vadd.f32 0.0, %v561
  %v563 = vpop.f32.mrb[0].mxu0
  %v564 = vpop.f32.mrb[0].mxu0
  %565 = vdwg.mxu0
  %v566 = vadd.f32 %v515, %v560
  %v567 = vadd.f32 %v516, %v562
  %v568 = vld [vmem:[%s2] sm:$0xff]
  %570 = vset.pattern.permute.xlu0 0
  %571 = vperm.xlu0 %570, %v568
  %v572 = vpop.permute.xlu0 %571
  %v574 = vadd.f32 %v566, %v572
  %v575 = vadd.f32 %v567, %v572
  %v576 = vmax.f32 %v574, 0.0
  %v577 = vmax.f32 %v575, 0.0
  %578 = vst [vmem:[%s3] sm:$0xff] %v576
  %579 = vst [vmem:[%s3 + $0x8] sm:$0xff] %v577
  // Predicated region
  $region14: #{tcn_forward.1} parent=0 // pred_check
    _
  $region15: #{tcn_forward.1} parent=0 // pred_check_branch
    %581 = sbr.rel (0) target = $region17
  $region16: #{tcn_forward.1} parent=0 // pred_region
    _
  $region17: #{tcn_forward.1} parent=0 // pred_fallthru
    _
  // Predicated region
  $region18: #{tcn_forward.1} parent=0 // pred_check
    _
  $region19: #{tcn_forward.1} parent=0 // pred_check_branch
    %583 = sbr.rel (0) target = $region21
  $region20: #{tcn_forward.1} parent=0 // pred_region
    _
  $region21: #{tcn_forward.1} parent=0 // pred_fallthru
    _

</llo_original>
